<compile_context>
chip_gen: v6e
topology: v6e:2x2x1
jax: 0.10.0
libtpu: 0.0.40
codegen_flags: <defaults>
</compile_context>

<pallas_src>
import jax
import jax.numpy as jnp
from jax.experimental import pallas as pl
from jax.experimental.pallas import tpu as pltpu


# ---------------------------------------------------------------------------
# Pass 1: per-batch per-channel sum and CxC Gram over the (H*W) samples.
# ---------------------------------------------------------------------------
def _stats_kernel(x_ref, sum_ref, gram_ref):
    # x_ref: (1, C, S_T) VMEM block.  sum_ref: (1, C, 1), gram_ref: (1, C, C)
    # f32 partial accumulators, resident across the inner (spatial) grid axis
    # only -> one independent accumulator per batch index (parallel-safe).
    @pl.when(pl.program_id(1) == 0)
    def _init():
        sum_ref[...] = jnp.zeros_like(sum_ref)
        gram_ref[...] = jnp.zeros_like(gram_ref)

    xt = x_ref[0].astype(jnp.float32)                        # (C, S_T)
    # Single-pass stats: per-channel sum (XLU lane reduce) ...
    sum_ref[0] += jnp.sum(xt, axis=1, keepdims=True)         # (C, 1)
    # ... and sum of x x^T, contracting the lane axis of both operands.
    # For tiny C the MXU is underutilized, but this pass is HBM-bound so the
    # matmul latency hides under the pipelined DMA.
    gram_ref[0] += jax.lax.dot_general(
        xt, xt, (((1,), (1,)), ((), ())), preferred_element_type=jnp.float32)


# ---------------------------------------------------------------------------
# Pass 2 (small C): out = M_eff @ x + c_eff via VPU broadcast-FMAs.
# ---------------------------------------------------------------------------
def _apply_fma_kernel(meff_ref, ceff_ref, x_ref, o_ref):
    # meff_ref: (C, C) SMEM, ceff_ref: (1, C) SMEM, x_ref/o_ref: (1, C, S_T) VMEM.
    xt = x_ref[0].astype(jnp.float32)                        # (C, S_T)
    c_dim = xt.shape[0]
    rows = []
    for o in range(c_dim):                                   # C*C scalar FMAs (VPU)
        acc = xt[0:1, :] * meff_ref[o, 0] + ceff_ref[0, o]
        for c in range(1, c_dim):
            acc = acc + xt[c:c + 1, :] * meff_ref[o, c]
        rows.append(acc)
    # Single lane-dense store of the whole (C, S_T) tile.
    o_ref[0] = jnp.concatenate(rows, axis=0).astype(o_ref.dtype)


# ---------------------------------------------------------------------------
# Pass 2 (large C): out = M_eff @ x + c_eff via the MXU (K = C contraction).
# ---------------------------------------------------------------------------
def _apply_mxu_kernel(meff_ref, ceff_ref, x_ref, o_ref):
    # meff_ref: (C, C) VMEM, ceff_ref: (C, 1) VMEM, x_ref/o_ref: (1, C, S_T) VMEM.
    xt = x_ref[0].astype(jnp.float32)
    y = jnp.dot(meff_ref[...].astype(jnp.float32), xt,
                preferred_element_type=jnp.float32) + ceff_ref[...]
    o_ref[0] = y.astype(o_ref.dtype)


def _pick_s_tile(S, C, itemsize):
    """Largest spatial tile (multiple of 128 lanes, dividing S) fitting a VMEM
    budget sized for v7x's 64 MiB (budget covers ~8 tile-sized live buffers:
    double-buffered in/out + f32 temps)."""
    budget_bytes = 24 << 20
    max_lanes = max(128, (budget_bytes // (8 * max(itemsize, 4) * max(C, 1)))
                    // 128 * 128)
    if S <= max_lanes:
        return S
    t = (min(max_lanes, S) // 128) * 128
    while t >= 128:
        if S % t == 0:
            return t
        t -= 128
    return S  # no 128-multiple divisor of S: fall back to whole rows


def resnet_block_forward(x_nchw, params, eps=1e-5):
    """Forward of ResnetBlock(dim, kernel_size=1, act=None) in training mode.

    x_nchw: (N, C, H, W).  params = (w1, b1, g1, be1, w2, b2, g2, be2) with
    w* of shape (C, C, 1, 1) and the rest of shape (C,).
    """
    N, C, H, W = x_nchw.shape
    S = H * W
    w1, b1, g1, be1, w2, b2, g2, be2 = params
    del b1, be1, b2  # cancel exactly against the batch means (see fold below)

    # NCHW -> (N, C, S) is a pure reshape (no transpose, no extra HBM pass).
    x3 = x_nchw.reshape(N, C, S)
    itemsize = jnp.dtype(x_nchw.dtype).itemsize
    s_tile = _pick_s_tile(S, C, itemsize)
    n_s = S // s_tile
    grid = (N, n_s)

    tile_bytes = C * s_tile * max(itemsize, 4)
    vmem_limit = int(min(48 << 20, max(16 << 20, 10 * tile_bytes + (1 << 20))))

    # ---- pass 1: per-batch per-channel sum + Gram, tiled over (N, S) ----
    # N axis is "parallel" (independent accumulators per batch -> megacore
    # shardable); the spatial axis is the resident-accumulator reduction.
    psum, pgram = pl.pallas_call(
        _stats_kernel,
        out_shape=(jax.ShapeDtypeStruct((N, C, 1), jnp.float32),
                   jax.ShapeDtypeStruct((N, C, C), jnp.float32)),
        grid=grid,
        in_specs=[pl.BlockSpec((1, C, s_tile), lambda n, s: (n, 0, s))],
        out_specs=(pl.BlockSpec((1, C, 1), lambda n, s: (n, 0, 0)),
                   pl.BlockSpec((1, C, C), lambda n, s: (n, 0, 0))),
        compiler_params=pltpu.CompilerParams(
            dimension_semantics=("parallel", "arbitrary"),
            vmem_limit_bytes=vmem_limit),
    )(x3)
    sum_x = jnp.sum(psum, axis=0)           # (C, 1)   tiny host-side reduce
    gram = jnp.sum(pgram, axis=0)           # (C, C)

    # ---- fold conv1 -> BN1 -> conv2 -> BN2 -> skip into one CxC affine map ----
    # y1 = A1 (x - mean_x) + beta1 with A1 = diag(g1/sqrt(var1+eps)) W1,
    # var1 = diag(W1 Cov_x W1^T);  h2 = W2 y1 + b2 is again affine in x, so
    # y2 = A2 (x - mean_x) + beta2 with A2 = diag(g2/sqrt(var2+eps)) (W2 A1),
    # var2 = diag(B2 Cov_x B2^T).  Conv biases and beta1 cancel in the BNs.
    f32 = jnp.float32
    M = N * S
    mean_x = (sum_x[:, 0] / M).astype(f32)                       # (C,)
    cov = gram.astype(f32) / M - jnp.outer(mean_x, mean_x)       # biased Cov_x
    W1 = w1.reshape(C, C).astype(f32)
    W2 = w2.reshape(C, C).astype(f32)
    var1 = jnp.einsum('oc,cd,od->o', W1, cov, W1)
    A1 = (g1.astype(f32) * jax.lax.rsqrt(var1 + eps))[:, None] * W1
    B2 = W2 @ A1
    var2 = jnp.einsum('oc,cd,od->o', B2, cov, B2)
    A2 = (g2.astype(f32) * jax.lax.rsqrt(var2 + eps))[:, None] * B2
    meff = jnp.eye(C, dtype=f32) + A2                 # skip connection folded in
    ceff = be2.astype(f32) - A2 @ mean_x              # (C,)

    # ---- pass 2: out = M_eff @ x + c_eff, tiled & pipelined over (N, S) ----
    out_shape = jax.ShapeDtypeStruct((N, C, S), x_nchw.dtype)
    x_spec = pl.BlockSpec((1, C, s_tile), lambda n, s: (n, 0, s))
    cparams = pltpu.CompilerParams(
        dimension_semantics=("parallel", "parallel"),   # v7x: shard across 2 TCs
        vmem_limit_bytes=vmem_limit)

    if C <= 16:
        # Small C: scalar coefficients in SMEM, C*C broadcast-FMAs on the VPU
        # (no dead-latency tiny MXU matmul, output stays lane-dense).
        smem = pl.BlockSpec(memory_space=pltpu.MemorySpace.SMEM)
        out3 = pl.pallas_call(
            _apply_fma_kernel,
            out_shape=out_shape,
            grid=grid,
            in_specs=[smem, smem, x_spec],
            out_specs=x_spec,
            compiler_params=cparams,
        )(meff, ceff.reshape(1, C), x3)
    else:
        out3 = pl.pallas_call(
            _apply_mxu_kernel,
            out_shape=out_shape,
            grid=grid,
            in_specs=[pl.BlockSpec((C, C), lambda n, s: (0, 0)),
                      pl.BlockSpec((C, 1), lambda n, s: (0, 0)),
                      x_spec],
            out_specs=x_spec,
            compiler_params=cparams,
        )(meff, ceff.reshape(C, 1), x3)

    return out3.reshape(N, C, H, W)


def _reference_forward(x_nchw, params, eps=1e-5):
    """Pure-JAX reference (same math as the PyTorch module in training mode)."""
    w1, b1, g1, be1, w2, b2, g2, be2 = params
    N, C, H, W = x_nchw.shape

    def conv1x1(x, w, b):
        return jnp.einsum('nchw,oc->nohw', x, w.reshape(C, C)) + b[None, :, None, None]

    def bn_train(x, g, be):
        mean = jnp.mean(x, axis=(0, 2, 3), keepdims=True)
        var = jnp.mean((x - mean) ** 2, axis=(0, 2, 3), keepdims=True)
        xn = (x - mean) * jax.lax.rsqrt(var + eps)
        return xn * g[None, :, None, None] + be[None, :, None, None]

    h = conv1x1(x_nchw, w1, b1)
    h = bn_train(h, g1, be1)
    h = conv1x1(h, w2, b2)
    h = bn_train(h, g2, be2)
    return x_nchw + h


if __name__ == "__main__":
    N, C, H, W = 2, 4, 16, 16  # dim=4
    key = jax.random.PRNGKey(0)
    kx, k1, k2, k3, k4, k5, k6, k7, k8 = jax.random.split(key, 9)

    x = jax.random.normal(kx, (N, C, H, W), dtype=jnp.float32)

    # Shapes match nn.Conv2d(dim, dim, 1, bias=True) and nn.BatchNorm2d(dim).
    w1 = 0.3 * jax.random.normal(k1, (C, C, 1, 1), dtype=jnp.float32)
    b1 = 0.1 * jax.random.normal(k2, (C,), dtype=jnp.float32)
    g1 = 1.0 + 0.1 * jax.random.normal(k3, (C,), dtype=jnp.float32)
    be1 = 0.1 * jax.random.normal(k4, (C,), dtype=jnp.float32)
    w2 = 0.3 * jax.random.normal(k5, (C, C, 1, 1), dtype=jnp.float32)
    b2 = 0.1 * jax.random.normal(k6, (C,), dtype=jnp.float32)
    g2 = 1.0 + 0.1 * jax.random.normal(k7, (C,), dtype=jnp.float32)
    be2 = 0.1 * jax.random.normal(k8, (C,), dtype=jnp.float32)
    params = (w1, b1, g1, be1, w2, b2, g2, be2)

    out = jax.block_until_ready(resnet_block_forward(x, params))
    ref = jax.block_until_ready(_reference_forward(x, params))

    assert out.shape == (N, C, H, W)
    assert jnp.allclose(out, ref, atol=2e-4, rtol=2e-4), \
        f"mismatch vs JAX reference (max abs err {jnp.max(jnp.abs(out - ref))})"
    print("KERNEL_OK")
</pallas_src>

<mosaic_0001>
module attributes {stable_mosaic.version = 11 : i64} {
  func.func @_stats_kernel(%arg0: i32, %arg1: i32, %arg2: memref<1x4x256xf32, #tpu.memory_space<vmem>>, %arg3: memref<1x4x1xf32, #tpu.memory_space<vmem>>, %arg4: memref<1x4x4xf32, #tpu.memory_space<vmem>>) attributes {dimension_semantics = [#tpu.dimension_semantics<parallel>, #tpu.dimension_semantics<arbitrary>], iteration_bounds = array<i64: 2, 1>, scalar_prefetch = 0 : i64, scratch_operands = 0 : i64, tpu.core_type = #tpu.core_type<tc>, window_params = [{transform_indices = @transform_0, window_bounds = array<i64: 1, 4, 256>}, {transform_indices = @transform_1, window_bounds = array<i64: 1, 4, 1>}, {transform_indices = @transform_2, window_bounds = array<i64: 1, 4, 4>}]} {
    %c0_i32 = arith.constant 0 : i32
    %0 = arith.cmpi eq, %arg1, %c0_i32 : i32
    %1 = arith.extui %0 : i1 to i32
    %c0_i32_0 = arith.constant 0 : i32
    %2 = arith.cmpi ne, %1, %c0_i32_0 : i32
    scf.if %2 {
      %cst_16 = arith.constant 0.000000e+00 : f32
      %20 = vector.broadcast %cst_16 : f32 to vector<1x4x1xf32>
      %c0_17 = arith.constant 0 : index
      %c0_18 = arith.constant 0 : index
      %c0_19 = arith.constant 0 : index
      %21 = vector.load %arg3[%c0_17, %c0_18, %c0_19] : memref<1x4x1xf32, #tpu.memory_space<vmem>>, vector<1x4x1xf32>
      tpu.vector_store %arg3[%c0_17, %c0_18, %c0_19], %20 {strides = array<i32>} : memref<1x4x1xf32, #tpu.memory_space<vmem>>, vector<1x4x1xf32>,
      %cst_20 = arith.constant 0.000000e+00 : f32
      %22 = vector.broadcast %cst_20 : f32 to vector<1x4x4xf32>
      %c0_21 = arith.constant 0 : index
      %c0_22 = arith.constant 0 : index
      %c0_23 = arith.constant 0 : index
      %23 = vector.load %arg4[%c0_21, %c0_22, %c0_23] : memref<1x4x4xf32, #tpu.memory_space<vmem>>, vector<1x4x4xf32>
      tpu.vector_store %arg4[%c0_21, %c0_22, %c0_23], %22 {strides = array<i32>} : memref<1x4x4xf32, #tpu.memory_space<vmem>>, vector<1x4x4xf32>,
    } else {
    }
    %c0 = arith.constant 0 : index
    %c0_1 = arith.constant 0 : index
    %c0_2 = arith.constant 0 : index
    %3 = vector.load %arg2[%c0, %c0_1, %c0_2] : memref<1x4x256xf32, #tpu.memory_space<vmem>>, vector<1x4x256xf32>
    %4 = vector.shape_cast %3 : vector<1x4x256xf32> to vector<4x256xf32>
    %c0_3 = arith.constant 0 : index
    %c0_4 = arith.constant 0 : index
    %c0_5 = arith.constant 0 : index
    %5 = vector.load %arg3[%c0_3, %c0_4, %c0_5] : memref<1x4x1xf32, #tpu.memory_space<vmem>>, vector<1x4x1xf32>
    %6 = vector.shape_cast %5 : vector<1x4x1xf32> to vector<4x1xf32>
    %cst = arith.constant dense<0.000000e+00> : vector<4xf32>
    %7 = vector.multi_reduction <add>, %4, %cst [1] : vector<4x256xf32> to vector<4xf32>
    %8 = vector.shape_cast %7 : vector<4xf32> to vector<4x1xf32>
    %9 = arith.addf %6, %8 : vector<4x1xf32>
    %c0_6 = arith.constant 0 : index
    %c0_7 = arith.constant 0 : index
    %c0_8 = arith.constant 0 : index
    %10 = vector.load %arg3[%c0_6, %c0_7, %c0_8] : memref<1x4x1xf32, #tpu.memory_space<vmem>>, vector<1x4x1xf32>
    %11 = vector.shape_cast %10 : vector<1x4x1xf32> to vector<4x1xf32>
    %12 = vector.shape_cast %9 : vector<4x1xf32> to vector<1x4x1xf32>
    tpu.vector_store %arg3[%c0_6, %c0_7, %c0_8], %12 {strides = array<i32>} : memref<1x4x1xf32, #tpu.memory_space<vmem>>, vector<1x4x1xf32>,
    %c0_9 = arith.constant 0 : index
    %c0_10 = arith.constant 0 : index
    %c0_11 = arith.constant 0 : index
    %13 = vector.load %arg4[%c0_9, %c0_10, %c0_11] : memref<1x4x4xf32, #tpu.memory_space<vmem>>, vector<1x4x4xf32>
    %14 = vector.shape_cast %13 : vector<1x4x4xf32> to vector<4x4xf32>
    %cst_12 = arith.constant dense<0.000000e+00> : vector<4x4xf32>
    %15 = tpu.matmul %4, %4, %cst_12 {dimension_numbers = #tpu.dot_dimension_numbers<[1], [1], [0], [0], [0, 0, 1, 0], [], []>} : vector<4x256xf32>, vector<4x256xf32>, vector<4x4xf32> -> vector<4x4xf32>
    %16 = arith.addf %14, %15 : vector<4x4xf32>
    %c0_13 = arith.constant 0 : index
    %c0_14 = arith.constant 0 : index
    %c0_15 = arith.constant 0 : index
    %17 = vector.load %arg4[%c0_13, %c0_14, %c0_15] : memref<1x4x4xf32, #tpu.memory_space<vmem>>, vector<1x4x4xf32>
    %18 = vector.shape_cast %17 : vector<1x4x4xf32> to vector<4x4xf32>
    %19 = vector.shape_cast %16 : vector<4x4xf32> to vector<1x4x4xf32>
    tpu.vector_store %arg4[%c0_13, %c0_14, %c0_15], %19 {strides = array<i32>} : memref<1x4x4xf32, #tpu.memory_space<vmem>>, vector<1x4x4xf32>,
    return
  }
  func.func @transform_0(%arg0: i32, %arg1: i32) -> (i32, i32, i32) {
    %c0_i32 = arith.constant 0 : i32
    %c0_i32_0 = arith.constant 0 : i32
    return %arg0, %c0_i32, %arg1 : i32, i32, i32
  }
  func.func @transform_1(%arg0: i32, %arg1: i32) -> (i32, i32, i32) {
    %c0_i32 = arith.constant 0 : i32
    %c0_i32_0 = arith.constant 0 : i32
    %c0_i32_1 = arith.constant 0 : i32
    return %arg0, %c0_i32, %c0_i32_0 : i32, i32, i32
  }
  func.func @transform_2(%arg0: i32, %arg1: i32) -> (i32, i32, i32) {
    %c0_i32 = arith.constant 0 : i32
    %c0_i32_0 = arith.constant 0 : i32
    %c0_i32_1 = arith.constant 0 : i32
    return %arg0, %c0_i32, %c0_i32_0 : i32, i32, i32
  }
}

</mosaic_0001>

<llo_original>
// kernel: tpu_custom_call.1
$region0: #{tpu_custom_call.1}
  #allocation0 [shape = 'u32[]', space=smem, size = 0x4, offset = 0x4, fixed_abs, tag = 'smem constant byte address 0x4 - core index']
  #allocation1 [shape = 'u32[144,128]{1,0:T(1,128)}', space=vmem, size = 0x12000, scoped, tag = 'internal scratch']
  %s0 = inlined_call_operand.hbm [shape: f32[2,4,256], index: 0, kind: input, shape index: {}]
  %s1 = inlined_call_operand.vmem [shape: f32[2,4,1], index: 1, kind: output, shape index: {0}]
  %s2 = inlined_call_operand.hbm [shape: f32[2,4,4], index: 2, kind: output, shape index: {1}]
  %3 = xla_tuple %s1, %s2
  %s4 = sld [smem:[#allocation0]]
  $region53: #{tpu_custom_call.1} parent=0
    _
  %s6 = ssub.s32 1, %s4
  %s7 = scalar_select 0, %s6, %s4
  $region1: #{tpu_custom_call.1} parent=0
    #allocation2 [shape = 'u8[8192]{0}', space=vmem, size = 0x2000, scoped, tag = 'input window, operand 0']
    #allocation3 [shape = 's32[2]{0}', space=sflag, size = 0x8, scoped, tag = 'scoped memory for tpu_custom_call.1']
    #allocation4 [shape = 's32[2]{0}', space=sflag, size = 0x8, scoped, tag = 'scoped memory for tpu_custom_call.1']
    #allocation5 [shape = 'u8[4096]{0}', space=vmem, size = 0x1000, scoped, tag = 'output window, operand 1']
    %8 = vsyncpa [#allocation3], 0
    %s9 = scalar_lea.sflag [#allocation3], 1
    %10 = vsyncpa %s9, 0
    %11 = vsyncpa [#allocation4], 0
    %s12 = scalar_lea.sflag [#allocation4], 1
    %13 = vsyncpa %s12, 0
    loop: start=0, step=1, limit=4
    $region2: #{tpu_custom_call.1} parent=1 // loop_pre_header
      _
    $region3: #{tpu_custom_call.1} parent=1 // loop_header
      %s15 = sphi 0, %s19
      %p16 = scmp.ge.s32.totalorder %s15, 4
      %s22 = sphi 0, %s34
      %s23 = sphi 0, %s30
      %s24 = sphi 0, %s22
      %s25 = sphi 0, %s23
      %s26 = sphi 0, %s24
      %s27 = sphi 0, %s25
      %s39 = sphi 0, %s41
      %s42 = sphi 0, %s39
      %s43 = sphi 0, %s42
      %s59 = sphi 0, %s43
      %s65 = sphi 0, %s67
      %s68 = sphi 0, %s65
      %s69 = sphi 0, %s68
      %s85 = sphi 0, %s69
      %s91 = sphi 0, %s93
      %s94 = sphi 0, %s91
      %s95 = sphi 0, %s94
      %s111 = sphi 0, %s95
    $region4: #{tpu_custom_call.1} parent=1 // loop_header_branch
      %18 = sbr.rel (%p16) target = $region8
    $region5: #{tpu_custom_call.1} parent=1 // loop_body
      %s20 = ssub.s32 %s15, 1
      %s21 = ssub.s32 %s15, 2
      %s28 = sadd.s32 1, %s23
      %p29 = scmp.ge.s32.totalorder %s28, 1
      %s30 = scalar_select %p29, 0, %s28
      %s31 = sadd.s32 1, %s22
      %s32 = scalar_select %p29, %s31, %s22
      %p33 = scmp.ge.s32.totalorder %s32, 2
      %s34 = scalar_select %p33, 0, %s32
      %s35 = ssub.s32 %s22, %s34
      %s36 = ssub.s32 %s23, %s30
      %s37 = sor.u32 %s35, %s36
      %p38 = scmp.eq.s32.totalorder %s37, 0
      %s40 = sadd.s32 %s39, 1
      %s41 = scalar_select %p38, %s39, %s40
      %p44 = pneg %p38
      %p45 = scmp.eq.s32.totalorder %s15, 1
      %p46 = por %p44, %p45
      %p47 = scmp.ne.s32.totalorder %s39, %s42
      %p48 = scmp.eq.s32.totalorder %s15, 0
      %p49 = por %p47, %p48
      %p50 = scmp.ne.s32.totalorder %s39, %s42
      %p51 = scmp.eq.s32.totalorder %s20, 1
      %p52 = por %p50, %p51
      %p53 = scmp.ne.s32.totalorder %s42, %s43
      %p54 = scmp.eq.s32.totalorder %s20, 0
      %p55 = por %p53, %p54
      %p56 = scmp.ne.s32.totalorder %s42, %s43
      %p57 = scmp.eq.s32.totalorder %s21, 1
      %p58 = por %p56, %p57
      %p60 = scmp.ne.s32.totalorder %s43, %s59
      %p61 = scmp.eq.s32.totalorder %s21, 0
      %p62 = por %p60, %p61
      %s63 = ssub.s32 %s22, %s34
      %p64 = scmp.eq.s32.totalorder %s63, 0
      %s66 = sadd.s32 %s65, 1
      %s67 = scalar_select %p64, %s65, %s66
      %p70 = pneg %p64
      %p71 = scmp.eq.s32.totalorder %s15, 1
      %p72 = por %p70, %p71
      %p73 = scmp.ne.s32.totalorder %s65, %s68
      %p74 = scmp.eq.s32.totalorder %s15, 0
      %p75 = por %p73, %p74
      %p76 = scmp.ne.s32.totalorder %s65, %s68
      %p77 = scmp.eq.s32.totalorder %s20, 1
      %p78 = por %p76, %p77
      %p79 = scmp.ne.s32.totalorder %s68, %s69
      %p80 = scmp.eq.s32.totalorder %s20, 0
      %p81 = por %p79, %p80
      %p82 = scmp.ne.s32.totalorder %s68, %s69
      %p83 = scmp.eq.s32.totalorder %s21, 1
      %p84 = por %p82, %p83
      %p86 = scmp.ne.s32.totalorder %s69, %s85
      %p87 = scmp.eq.s32.totalorder %s21, 0
      %p88 = por %p86, %p87
      %s89 = ssub.s32 %s22, %s34
      %p90 = scmp.eq.s32.totalorder %s89, 0
      %s92 = sadd.s32 %s91, 1
      %s93 = scalar_select %p90, %s91, %s92
      %p96 = pneg %p90
      %p97 = scmp.eq.s32.totalorder %s15, 1
      %p98 = por %p96, %p97
      %p99 = scmp.ne.s32.totalorder %s91, %s94
      %p100 = scmp.eq.s32.totalorder %s15, 0
      %p101 = por %p99, %p100
      %p102 = scmp.ne.s32.totalorder %s91, %s94
      %p103 = scmp.eq.s32.totalorder %s20, 1
      %p104 = por %p102, %p103
      %p105 = scmp.ne.s32.totalorder %s94, %s95
      %p106 = scmp.eq.s32.totalorder %s20, 0
      %p107 = por %p105, %p106
      %p108 = scmp.ne.s32.totalorder %s94, %s95
      %p109 = scmp.eq.s32.totalorder %s21, 1
      %p110 = por %p108, %p109
      %p112 = scmp.ne.s32.totalorder %s95, %s111
      %p113 = scmp.eq.s32.totalorder %s21, 0
      %p114 = por %p112, %p113
      %p115 = scmp.le.s32.totalorder 1, %s15
      %p116 = scmp.lt.s32.totalorder %s15, 3
      %p117 = pnand %p115, %p116
      %p118 = pneg %p117
      // Predicated region
      $region9: #{tpu_custom_call.1} parent=5 // pred_check
        _
      $region10: #{tpu_custom_call.1} parent=5 // pred_check_branch
        %120 = sbr.rel (%p117) target = $region12
      $region11: #{tpu_custom_call.1} parent=5 // pred_region
        %s121 = ssub.s32 %s15, 1
      $region12: #{tpu_custom_call.1} parent=5 // pred_fallthru
        _
      %p122 = scmp.lt.s32.totalorder %s15, 2
      // Predicated region
      $region13: #{tpu_custom_call.1} parent=5 // pred_check
        %p123 = pneg %p122
      $region14: #{tpu_custom_call.1} parent=5 // pred_check_branch
        %125 = sbr.rel (%p123) target = $region16
      $region15: #{tpu_custom_call.1} parent=5 // pred_region
        // Predicated region
        $region17: #{tpu_custom_call.1} parent=15 // pred_check
          %p126 = pneg %p49
        $region18: #{tpu_custom_call.1} parent=15 // pred_check_branch
          %128 = sbr.rel (%p126) target = $region20
        $region19: #{tpu_custom_call.1} parent=15 // pred_region
          %s129 = sand.u32 %s39, 1
          %s130 = scalar_lea.sflag [#allocation3], %s129
          %s131 = sand.u32 %s39, 1
          %s132 = smul.addr %s131, 8
          %s133 = scalar_lea.vmem [#allocation2], %s132
          %s134 = smul.u32 2, %s23
          %s136 = ssub.s32 128, 128
          %137 = vsyncadd %s130, %s136
          %s138 = smul.addr %s22, 2
          %s139 = sadd.s32 %s134, %s138
          %s140 = smul.addr %s139, 64
          %s141 = scalar_lea.hbm %s0, %s140
          %s143 = sshll.u32 %s133, 4
          %s144 = int_to_ptr.vmem [resolvable:$true] %s143
          %146 = dma.hbm_to_vmem [thread:$0]  %s141, 128, %s144, %s130
        $region20: #{tpu_custom_call.1} parent=15 // pred_fallthru
          _
      $region16: #{tpu_custom_call.1} parent=5 // pred_fallthru
        _
      %p147 = scmp.le.s32.totalorder 1, %s15
      %p148 = scmp.lt.s32.totalorder %s15, 3
      %p149 = pnand %p147, %p148
      %p150 = pneg %p149
      // Predicated region
      $region21: #{tpu_custom_call.1} parent=5 // pred_check
        _
      $region22: #{tpu_custom_call.1} parent=5 // pred_check_branch
        %152 = sbr.rel (%p149) target = $region24
      $region23: #{tpu_custom_call.1} parent=5 // pred_region
        %s153 = ssub.s32 %s15, 1
        %s154 = sand.u32 %s42, 1
        %s155 = scalar_lea.sflag [#allocation3], %s154
        %s156 = sand.u32 %s42, 1
        %s157 = smul.addr %s156, 8
        %s158 = scalar_lea.vmem [#allocation2], %s157
        // Predicated region
        $region25: #{tpu_custom_call.1} parent=23 // pred_check
          %p159 = pneg %p55
        $region26: #{tpu_custom_call.1} parent=23 // pred_check_branch
          %161 = sbr.rel (%p159) target = $region28
        $region27: #{tpu_custom_call.1} parent=23 // pred_region
          %162 = dma.done %s155, 128
        $region28: #{tpu_custom_call.1} parent=23 // pred_fallthru
          _
        %s163 = sand.u32 %s42, 1
        %s164 = scalar_lea.sflag [#allocation3], %s163
        %s165 = sand.u32 %s42, 1
        %s166 = smul.addr %s165, 8
        %s167 = scalar_lea.vmem [#allocation2], %s166
        %p168 = pneg %p55
        %p169 = pneg %p52
        %p170 = pneg %p81
        %p171 = pneg %p78
        %p172 = scmp.lt.s32.totalorder %s24, 1
        %s173 = scalar_select %p172, %s24, 1
        %s174 = smul.addr %s173, 4
        %s175 = scalar_lea.vmem %s1, %s174
        %p176 = pneg %p107
        %p177 = pneg %p104
        %s178 = sand.u32 %s94, 1
        %s179 = scalar_lea.sflag [#allocation4], %s178
        %s180 = sand.u32 %s94, 1
        %s181 = smul.addr %s180, 4
        %s182 = scalar_lea.vmem [#allocation5], %s181
        %s183 = smul.u32 2, %s25
        %p184 = scmp.lt.s32.totalorder %s24, 1
        %s185 = scalar_select %p184, %s24, 1
        %s186 = smul.addr %s185, 4
        %s187 = scalar_lea.vmem %s1, %s186
        %p188 = scmp.eq.s32.totalorder %s25, 0
        // Predicated region
        $region29: #{tpu_custom_call.1} parent=23 // pred_check
          %p189 = pneg %p188
        $region30: #{tpu_custom_call.1} parent=23 // pred_check_branch
          %191 = sbr.rel (%p189) target = $region32
        $region31: #{tpu_custom_call.1} parent=23 // pred_region
          %vm192 = vcmask 3072
          %193 = vst.msk [vmem:[%s187] sm:$0xf] %vm192, 0.0
          %vm194 = vcmask 27648
          %195 = vst.msk [vmem:[%s182] sm:$0xf] %vm194, 0.0
        $region32: #{tpu_custom_call.1} parent=23 // pred_fallthru
          _
        %v196 = vld [vmem:[%s158] sm:$0xff]
        %v197 = vld [vmem:[%s187] sm:$0xf]
        %v199 = vcombine.high %v196, %v196
        %vm201 = vcmask 1043456
        %v202 = vsel %vm201, %v196, 0.0
        %v203 = vsel %vm201, %v199, 0.0
        %v204 = vadd.f32 %v202, %v203
        %205 = vadd.xlane.f32.xlu0 %v204
        %v206 = vpop.xlane.xlu0 %205
        %v207 = vadd.f32 %v197, %v206
        %vm208 = vcmask 3072
        %209 = vst.msk [vmem:[%s187] sm:$0xf] %vm208, %v207
        %v210 = vld [vmem:[%s182] sm:$0xf]
        %211 = vmatprep.subr.mxu0 0.0
        %212 = vmatpush1.xpose.msra.mxu0 0.0
        %213 = vmatprep.subr.mxu0 0.0
        %214 = vmatpush1.xpose.msra.mxu0 0.0
        %215 = vmatprep.subr.mxu0 0.0
        %216 = vmatpush1.xpose.msra.mxu0 0.0
        %217 = vmatprep.subr.mxu0 0.0
        %218 = vmatpush1.xpose.msra.mxu0 0.0
        %219 = vmatprep.subr.mxu0 0.0
        %220 = vmatpush1.xpose.msra.mxu0 0.0
        %221 = vmatprep.subr.mxu0 0.0
        %222 = vmatpush1.xpose.msra.mxu0 0.0
        %223 = vmatprep.subr.mxu0 0.0
        %224 = vmatpush1.xpose.msra.mxu0 0.0
        %225 = vmatprep.subr.mxu0 0.0
        %226 = vmatpush1.xpose.msra.mxu0 0.0
        %227 = vmatprep.subr.mxu0 0.0
        %228 = vmatpush1.xpose.msra.mxu0 0.0
        %229 = vmatprep.subr.mxu0 0.0
        %230 = vmatpush1.xpose.msra.mxu0 0.0
        %231 = vmatprep.subr.mxu0 0.0
        %232 = vmatpush1.xpose.msra.mxu0 0.0
        %233 = vmatprep.subr.mxu0 0.0
        %234 = vmatpush1.xpose.msra.mxu0 0.0
        %235 = vmatprep.subr.mxu0 0.0
        %236 = vmatpush1.xpose.msra.mxu0 0.0
        %237 = vmatprep.subr.mxu0 0.0
        %238 = vmatpush1.xpose.msra.mxu0 0.0
        %239 = vmatprep.subr.mxu0 0.0
        %240 = vmatpush1.xpose.msra.mxu0 0.0
        %241 = vmatprep.subr.mxu0 %v199
        %242 = vmatpush1.xpose.msra.mxu0 %v196
        %243 = vmatprep.subr.mxu0 0.0
        %244 = vmatpush2.xpose.msra.mxu0 0.0
        %245 = vmatprep.subr.mxu0 0.0
        %246 = vmatpush2.xpose.msra.mxu0 0.0
        %247 = vmatprep.subr.mxu0 0.0
        %248 = vmatpush2.xpose.msra.mxu0 0.0
        %249 = vmatprep.subr.mxu0 0.0
        %250 = vmatpush2.xpose.msra.mxu0 0.0
        %251 = vmatprep.subr.mxu0 0.0
        %252 = vmatpush2.xpose.msra.mxu0 0.0
        %253 = vmatprep.subr.mxu0 0.0
        %254 = vmatpush2.xpose.msra.mxu0 0.0
        %255 = vmatprep.subr.mxu0 0.0
        %256 = vmatpush2.xpose.msra.mxu0 0.0
        %257 = vmatprep.subr.mxu0 0.0
        %258 = vmatpush2.xpose.msra.mxu0 0.0
        %259 = vmatprep.subr.mxu0 0.0
        %260 = vmatpush2.xpose.msra.mxu0 0.0
        %261 = vmatprep.subr.mxu0 0.0
        %262 = vmatpush2.xpose.msra.mxu0 0.0
        %263 = vmatprep.subr.mxu0 0.0
        %264 = vmatpush2.xpose.msra.mxu0 0.0
        %265 = vmatprep.subr.mxu0 0.0
        %266 = vmatpush2.xpose.msra.mxu0 0.0
        %267 = vmatprep.subr.mxu0 0.0
        %268 = vmatpush2.xpose.msra.mxu0 0.0
        %269 = vmatprep.subr.mxu0 0.0
        %270 = vmatpush2.xpose.msra.mxu0 0.0
        %271 = vmatprep.subr.mxu0 0.0
        %272 = vmatpush2.xpose.msra.mxu0 0.0
        %273 = vmatprep.subr.mxu0 0.0
        %274 = vmatpush2.xpose.msra.mxu0 0.0
        %275 = vmatprep.mubr.f32.mxu0 %v199
        %276 = vmatmul.mubr.f32.gmra.mxu0 %v196
        %v277 = vpop.f32.mrf.mxu0
        %v278 = vadd.f32 0.0, %v277
        %v279 = vpop.f32.mrf.mxu0
        %280 = vdwg.mxu0
        %v281 = vadd.f32 %v210, %v278
        %vm282 = vcmask 27648
        %283 = vst.msk [vmem:[%s182] sm:$0xf] %vm282, %v281
        %p284 = scmp.lt.s32.totalorder %s24, 1
        %s285 = scalar_select %p284, %s24, 1
        %s286 = smul.addr %s285, 4
        %s287 = scalar_lea.vmem %s1, %s286
        %s288 = sand.u32 %s94, 1
        %s289 = scalar_lea.sflag [#allocation4], %s288
        %s290 = sand.u32 %s94, 1
        %s291 = smul.addr %s290, 4
        %s292 = scalar_lea.vmem [#allocation5], %s291
        // Predicated region
        $region33: #{tpu_custom_call.1} parent=23 // pred_check
          %p293 = pneg %p78
        $region34: #{tpu_custom_call.1} parent=23 // pred_check_branch
          %295 = sbr.rel (%p293) target = $region36
        $region35: #{tpu_custom_call.1} parent=23 // pred_region
          _
        $region36: #{tpu_custom_call.1} parent=23 // pred_fallthru
          _
        // Predicated region
        $region37: #{tpu_custom_call.1} parent=23 // pred_check
          %p296 = pneg %p104
        $region38: #{tpu_custom_call.1} parent=23 // pred_check_branch
          %298 = sbr.rel (%p296) target = $region40
        $region39: #{tpu_custom_call.1} parent=23 // pred_region
          %s300 = ssub.s32 64, 64
          %301 = vsyncadd %s289, %s300
          %s302 = smul.addr %s24, 64
          %s303 = scalar_lea.hbm %s2, %s302
          %s305 = sshll.u32 %s292, 4
          %s306 = int_to_ptr.vmem [resolvable:$true] %s305
          %308 = dma.vmem_to_hbm [thread:$0]  %s306, 64, %s303, %s289
        $region40: #{tpu_custom_call.1} parent=23 // pred_fallthru
          _
      $region24: #{tpu_custom_call.1} parent=5 // pred_fallthru
        _
      %p309 = scmp.le.s32.totalorder 2, %s15
      // Predicated region
      $region41: #{tpu_custom_call.1} parent=5 // pred_check
        %p310 = pneg %p309
      $region42: #{tpu_custom_call.1} parent=5 // pred_check_branch
        %312 = sbr.rel (%p310) target = $region44
      $region43: #{tpu_custom_call.1} parent=5 // pred_region
        %s313 = ssub.s32 %s15, 2
        // Predicated region
        $region45: #{tpu_custom_call.1} parent=43 // pred_check
          %p314 = pneg %p84
        $region46: #{tpu_custom_call.1} parent=43 // pred_check_branch
          %316 = sbr.rel (%p314) target = $region48
        $region47: #{tpu_custom_call.1} parent=43 // pred_region
          %p317 = scmp.lt.s32.totalorder %s26, 1
          %s318 = scalar_select %p317, %s26, 1
          %s319 = smul.addr %s318, 4
          %s320 = scalar_lea.vmem %s1, %s319
        $region48: #{tpu_custom_call.1} parent=43 // pred_fallthru
          _
        // Predicated region
        $region49: #{tpu_custom_call.1} parent=43 // pred_check
          %p321 = pneg %p110
        $region50: #{tpu_custom_call.1} parent=43 // pred_check_branch
          %323 = sbr.rel (%p321) target = $region52
        $region51: #{tpu_custom_call.1} parent=43 // pred_region
          %s324 = sand.u32 %s95, 1
          %s325 = scalar_lea.sflag [#allocation4], %s324
          %s326 = sand.u32 %s95, 1
          %s327 = smul.addr %s326, 4
          %s328 = scalar_lea.vmem [#allocation5], %s327
          %329 = dma.done %s325, 64
        $region52: #{tpu_custom_call.1} parent=43 // pred_fallthru
          _
      $region44: #{tpu_custom_call.1} parent=5 // pred_fallthru
        _
    $region6: #{tpu_custom_call.1} parent=1 // loop_footer
      %s19 = sadd.s32 1, %s15
    $region7: #{tpu_custom_call.1} parent=1 // loop_footer_branch
      %14 = sbr.rel target = $region3
    $region8: #{tpu_custom_call.1} parent=1 // loop_exit
      _
    %330 = vsyncpa [#allocation3], 1
    %s331 = scalar_lea.sflag [#allocation3], 1
    %332 = vsyncpa %s331, 1
    %333 = vsyncpa [#allocation4], 1
    %s334 = scalar_lea.sflag [#allocation4], 1
    %335 = vsyncpa %s334, 1

</llo_original>
